<compile_context>
chip_gen: v6e
topology: v6e:2x2x1
jax: 0.10.0
libtpu: 0.0.40
codegen_flags: <defaults>
</compile_context>

<pallas_src>
import functools

import jax
import jax.numpy as jnp
from jax.experimental import pallas as pl
from jax.experimental.pallas import tpu as pltpu

LANE = 128


def _round_up(x, m):
    return (x + m - 1) // m * m


def _vmem_budget_bytes():
    """~85% of this generation's per-core VMEM (fallback: v7x's 64 MiB)."""
    try:
        cap = int(pltpu.get_tpu_info().vmem_capacity_bytes)
    except Exception:
        cap = 64 << 20
    return int(cap * 0.85)


def _ffn_kernel_resident(x_ref, w1_ref, w2_ref, o_ref, *, h_dtype):
    """Weights fully VMEM-resident. Grid = (tokens // tm,), no accumulator."""
    h = jnp.dot(x_ref[...], w1_ref[...], preferred_element_type=h_dtype)  # MXU
    h = jnp.maximum(h, 0.0)                                               # ReLU (VPU)
    o_ref[...] = jnp.dot(h.astype(w2_ref.dtype), w2_ref[...],
                         preferred_element_type=jnp.float32).astype(o_ref.dtype)


def _ffn_kernel_tiled(x_ref, w1_ref, w2_ref, o_ref, acc_ref, *, h_dtype):
    """dff tiled as a reduction axis. Grid = (tokens // tm, dff // tk)."""
    k = pl.program_id(1)

    @pl.when(k == 0)
    def _():
        acc_ref[...] = jnp.zeros_like(acc_ref)

    h = jnp.dot(x_ref[...], w1_ref[...], preferred_element_type=h_dtype)  # (tm, tk)
    h = jnp.maximum(h, 0.0)
    acc_ref[...] += jnp.dot(h.astype(w2_ref.dtype), w2_ref[...],
                            preferred_element_type=jnp.float32)           # (tm, D)

    @pl.when(k == pl.num_programs(1) - 1)
    def _():
        o_ref[...] = acc_ref[...].astype(o_ref.dtype)


def prepare_ffn_weights(w1, w2, matmul_dtype=None):
    """Cast + lane-pad weights once (hoist this out of a per-step call loop)."""
    if matmul_dtype is not None:
        if w1.dtype != matmul_dtype:
            w1 = w1.astype(matmul_dtype)
        if w2.dtype != matmul_dtype:
            w2 = w2.astype(matmul_dtype)
    D, dff = w1.shape
    D_pad, dff_pad = _round_up(D, LANE), _round_up(dff, LANE)
    if (D_pad, dff_pad) != (D, dff):
        w1 = jnp.pad(w1, ((0, D_pad - D), (0, dff_pad - dff)))
        w2 = jnp.pad(w2, ((0, dff_pad - dff), (0, D_pad - D)))
    return w1, w2


def feed_forward_block(x, w1, w2, *, tm=512, tk=None, matmul_dtype=None):
    """
    out = relu(x @ w1) @ w2   (FeedForwardBlock forward, activation='relu', no bias)

    x  : (..., embed_dim)
    w1 : (embed_dim, dff)   -- transpose of torch linear1.weight (may be pre-padded/cast
                               via prepare_ffn_weights; padding/cast is then skipped here)
    w2 : (dff, embed_dim)   -- transpose of torch linear2.weight
    tm : token tile (default 512 keeps weight re-streaming compute-bound on v6e/v7x;
         capped so the parallel token axis keeps >= 2 tiles for v7x megacore)
    tk : optional dff tile. Default: whole dff when W1+W2 fit the VMEM budget
         (weights stay resident across all token tiles), else the largest
         128-aligned tile that fits.
    matmul_dtype : optional MXU operand dtype. Pass jnp.bfloat16 for performance on
         all generations (f32 accumulation is kept; output keeps x.dtype).
    """
    orig_shape = x.shape
    D = orig_shape[-1]
    out_dtype = x.dtype

    if matmul_dtype is not None:
        if x.dtype != matmul_dtype:
            x = x.astype(matmul_dtype)
        if w1.dtype != matmul_dtype:
            w1 = w1.astype(matmul_dtype)
        if w2.dtype != matmul_dtype:
            w2 = w2.astype(matmul_dtype)

    D_pad = _round_up(D, LANE)
    assert w1.shape[0] in (D, D_pad), "w1 must be (embed_dim, dff) (optionally pre-padded)"
    assert w2.shape[1] == w1.shape[0] and w2.shape[0] == w1.shape[1]
    dff_128 = _round_up(w1.shape[1], LANE)

    tokens = 1
    for s in orig_shape[:-1]:
        tokens *= s
    x2d = x.reshape(tokens, D)

    cdtype = x2d.dtype
    cbytes = jnp.dtype(cdtype).itemsize
    obytes = jnp.dtype(out_dtype).itemsize
    h_dtype = jnp.bfloat16 if cdtype == jnp.bfloat16 else jnp.float32
    hbytes = jnp.dtype(h_dtype).itemsize

    # Sublane granularity of the token dim (bf16 packs 2 rows per sublane).
    sub = 16 if cbytes == 2 else 8

    # Token tile: fill the MXU, cap to the padded token count, and keep >= 2 tiles
    # on the (only) parallel axis when the token count allows it (v7x: 2 TCs).
    tm_eff = max(sub, min(_round_up(tm, sub), _round_up(tokens, sub)))
    if tokens > sub:
        tm_eff = min(tm_eff, _round_up((tokens + 1) // 2, sub))

    budget = _vmem_budget_bytes()
    headroom = 2 << 20

    def est_vmem(tm_, tk_):
        return (2 * tm_ * D_pad * cbytes       # x tile (double-buffered)
                + 2 * tm_ * D_pad * obytes     # out tile (double-buffered, out dtype)
                + tm_ * D_pad * 4              # f32 accumulator (tiled path)
                + 2 * D_pad * tk_ * cbytes     # W1 block (double-buffered)
                + 2 * tk_ * D_pad * cbytes     # W2 block (double-buffered)
                + tm_ * tk_ * hbytes)          # (tm, tk) intermediate

    if tk is None:
        # Prefer fully VMEM-resident weights; otherwise shrink tk (then tm) to fit.
        tk = dff_128
        while est_vmem(tm_eff, tk) + headroom > budget and tk > LANE:
            tk = max(LANE, _round_up(tk // 2, LANE))
        while est_vmem(tm_eff, tk) + headroom > budget and tm_eff > sub:
            tm_eff = max(sub, (tm_eff // 2) // sub * sub)
    else:
        tk = min(_round_up(tk, LANE), dff_128)

    resident = tk >= dff_128
    dff_pad = dff_128 if resident else _round_up(dff_128, tk)
    num_k = dff_pad // tk

    tokens_pad = _round_up(tokens, tm_eff)
    num_m = tokens_pad // tm_eff

    # Zero-pad (zeros are exactly neutral through matmul + relu + matmul).
    if (tokens_pad, D_pad) != (tokens, D):
        x2d = jnp.pad(x2d, ((0, tokens_pad - tokens), (0, D_pad - D)))
    if w1.shape != (D_pad, dff_pad):
        w1 = jnp.pad(w1, ((0, D_pad - w1.shape[0]), (0, dff_pad - w1.shape[1])))
    if w2.shape != (dff_pad, D_pad):
        w2 = jnp.pad(w2, ((0, dff_pad - w2.shape[0]), (0, D_pad - w2.shape[1])))

    est = est_vmem(tm_eff, tk) + headroom
    vmem_limit = min(max(int(est * 1.2), 32 << 20), max(budget, est))

    flops = int(4 * tokens_pad * D_pad * dff_pad)   # two matmuls, 2*M*K*N each
    weight_streams = 1 if resident else num_m       # tiled path re-streams W1/W2 per token tile
    bytes_accessed = int(x2d.size * cbytes
                         + tokens_pad * D_pad * obytes
                         + (w1.size + w2.size) * cbytes * weight_streams)

    if resident:
        kernel = functools.partial(_ffn_kernel_resident, h_dtype=h_dtype)
        grid_spec = pltpu.PrefetchScalarGridSpec(
            num_scalar_prefetch=0,
            grid=(num_m,),
            in_specs=[
                pl.BlockSpec((tm_eff, D_pad), lambda i: (i, 0)),
                pl.BlockSpec((D_pad, dff_pad), lambda i: (0, 0)),   # constant -> DMA'd once
                pl.BlockSpec((dff_pad, D_pad), lambda i: (0, 0)),   # constant -> DMA'd once
            ],
            out_specs=pl.BlockSpec((tm_eff, D_pad), lambda i: (i, 0)),
        )
        dim_sem = ("parallel",)
    else:
        kernel = functools.partial(_ffn_kernel_tiled, h_dtype=h_dtype)
        grid_spec = pltpu.PrefetchScalarGridSpec(
            num_scalar_prefetch=0,
            grid=(num_m, num_k),
            in_specs=[
                pl.BlockSpec((tm_eff, D_pad), lambda i, k: (i, 0)),
                pl.BlockSpec((D_pad, tk), lambda i, k: (0, k)),
                pl.BlockSpec((tk, D_pad), lambda i, k: (k, 0)),
            ],
            out_specs=pl.BlockSpec((tm_eff, D_pad), lambda i, k: (i, 0)),
            scratch_shapes=[pltpu.VMEM((tm_eff, D_pad), jnp.float32)],
        )
        dim_sem = ("parallel", "arbitrary")

    out2d = pl.pallas_call(
        kernel,
        out_shape=jax.ShapeDtypeStruct((tokens_pad, D_pad), out_dtype),
        grid_spec=grid_spec,
        compiler_params=pltpu.CompilerParams(
            dimension_semantics=dim_sem,
            vmem_limit_bytes=vmem_limit,
        ),
        cost_estimate=pl.CostEstimate(
            flops=flops, transcendentals=0, bytes_accessed=bytes_accessed),
    )(x2d, w1, w2)

    out2d = out2d[:tokens, :D]
    return out2d.reshape(*orig_shape[:-1], D)


def init_params(key, embed_dim, dff, dtype=jnp.float32):
    """Deterministic uniform init matching nn.Linear shapes (stored transposed)."""
    k1, k2 = jax.random.split(key)
    bound1 = 1.0 / (embed_dim ** 0.5)
    bound2 = 1.0 / (dff ** 0.5)
    w1 = jax.random.uniform(k1, (embed_dim, dff), dtype, -bound1, bound1)
    w2 = jax.random.uniform(k2, (dff, embed_dim), dtype, -bound2, bound2)
    return w1, w2


def ffn_reference(x, w1, w2):
    """Pure-JAX reference of the PyTorch forward (relu, no bias)."""
    h = jnp.maximum(x @ w1, 0.0)
    return h @ w2


if __name__ == "__main__":
    key = jax.random.PRNGKey(0)
    kx, kp = jax.random.split(key)

    # Case 1: canonical small shape (dff = 4 * embed_dim), f32, resident weights.
    batch, seq, embed_dim = 2, 8, 32
    dff = 4 * embed_dim
    x = jax.random.normal(kx, (batch, seq, embed_dim), dtype=jnp.float32)
    w1, w2 = init_params(kp, embed_dim, dff)

    out = jax.block_until_ready(feed_forward_block(x, w1, w2))
    ref = ffn_reference(x, w1, w2)
    assert out.shape == (batch, seq, embed_dim)
    assert jnp.allclose(out, ref, atol=1e-5, rtol=1e-5), "f32 mismatch vs reference"

    # Case 2: ragged token count + non-128 feature dims (exercises padding path).
    b2, s2, d2 = 3, 5, 48
    k1, k2 = jax.random.split(kp)
    x2 = jax.random.normal(k1, (b2, s2, d2), dtype=jnp.float32)
    w1b, w2b = init_params(k2, d2, 4 * d2)
    out2 = jax.block_until_ready(feed_forward_block(x2, w1b, w2b))
    ref2 = ffn_reference(x2, w1b, w2b)
    assert out2.shape == (b2, s2, d2)
    assert jnp.allclose(out2, ref2, atol=1e-5, rtol=1e-5), "padded-path mismatch"

    # Case 3: bf16 MXU operands with pre-prepared (cast + padded) weights.
    w1_prep, w2_prep = prepare_ffn_weights(w1, w2, matmul_dtype=jnp.bfloat16)
    out3 = jax.block_until_ready(
        feed_forward_block(x, w1_prep, w2_prep, matmul_dtype=jnp.bfloat16))
    assert out3.dtype == x.dtype
    assert jnp.allclose(out3, ref, atol=5e-2, rtol=5e-2), "bf16 mismatch vs reference"

    # Case 4: force the dff-tiled reduction path (tk < dff -> accumulator kernel).
    d4, dff4 = 64, 512
    k3, k4 = jax.random.split(k2)
    x4 = jax.random.normal(k3, (batch, seq, d4), dtype=jnp.float32)
    w1c, w2c = init_params(k4, d4, dff4)
    out4 = jax.block_until_ready(feed_forward_block(x4, w1c, w2c, tk=128))
    ref4 = ffn_reference(x4, w1c, w2c)
    assert out4.shape == (batch, seq, d4)
    assert jnp.allclose(out4, ref4, atol=1e-5, rtol=1e-5), "tiled-path mismatch"

    print("KERNEL_OK")
</pallas_src>

<mosaic_0001>
module attributes {stable_mosaic.version = 11 : i64} {
  func.func @_ffn_kernel_resident(%arg0: i32, %arg1: memref<8x128xf32, #tpu.memory_space<vmem>>, %arg2: memref<128x128xf32, #tpu.memory_space<vmem>>, %arg3: memref<128x128xf32, #tpu.memory_space<vmem>>, %arg4: memref<8x128xf32, #tpu.memory_space<vmem>>) attributes {dimension_semantics = [#tpu.dimension_semantics<parallel>], iteration_bounds = array<i64: 2>, scalar_prefetch = 0 : i64, scratch_operands = 0 : i64, tpu.core_type = #tpu.core_type<tc>, window_params = [{transform_indices = @transform_0, window_bounds = array<i64: 8, 128>}, {pipeline_mode = #tpu.pipeline_mode<synchronous>, transform_indices = @transform_1, window_bounds = array<i64: 128, 128>}, {pipeline_mode = #tpu.pipeline_mode<synchronous>, transform_indices = @transform_2, window_bounds = array<i64: 128, 128>}, {transform_indices = @transform_3, window_bounds = array<i64: 8, 128>}]} {
    %c0 = arith.constant 0 : index
    %c0_0 = arith.constant 0 : index
    %0 = vector.load %arg1[%c0, %c0_0] : memref<8x128xf32, #tpu.memory_space<vmem>>, vector<8x128xf32>
    %c0_1 = arith.constant 0 : index
    %c0_2 = arith.constant 0 : index
    %1 = vector.load %arg2[%c0_1, %c0_2] : memref<128x128xf32, #tpu.memory_space<vmem>>, vector<128x128xf32>
    %cst = arith.constant dense<0.000000e+00> : vector<8x128xf32>
    %2 = tpu.matmul %0, %1, %cst {dimension_numbers = #tpu.dot_dimension_numbers<[1], [0], [0], [1], [0, 0, 1, 1], [], []>} : vector<8x128xf32>, vector<128x128xf32>, vector<8x128xf32> -> vector<8x128xf32>
    %cst_3 = arith.constant 0.000000e+00 : f32
    %3 = vector.broadcast %cst_3 : f32 to vector<8x128xf32>
    %4 = arith.maximumf %2, %3 : vector<8x128xf32>
    %c0_4 = arith.constant 0 : index
    %c0_5 = arith.constant 0 : index
    %5 = vector.load %arg3[%c0_4, %c0_5] : memref<128x128xf32, #tpu.memory_space<vmem>>, vector<128x128xf32>
    %cst_6 = arith.constant dense<0.000000e+00> : vector<8x128xf32>
    %6 = tpu.matmul %4, %5, %cst_6 {dimension_numbers = #tpu.dot_dimension_numbers<[1], [0], [0], [1], [0, 0, 1, 1], [], []>} : vector<8x128xf32>, vector<128x128xf32>, vector<8x128xf32> -> vector<8x128xf32>
    %c0_7 = arith.constant 0 : index
    %c0_8 = arith.constant 0 : index
    %7 = vector.load %arg4[%c0_7, %c0_8] : memref<8x128xf32, #tpu.memory_space<vmem>>, vector<8x128xf32>
    tpu.vector_store %arg4[%c0_7, %c0_8], %6 {strides = array<i32>} : memref<8x128xf32, #tpu.memory_space<vmem>>, vector<8x128xf32>,
    return
  }
  func.func @transform_0(%arg0: i32) -> (i32, i32) {
    %c0_i32 = arith.constant 0 : i32
    %c0_i32_0 = arith.constant 0 : i32
    return %arg0, %c0_i32 : i32, i32
  }
  func.func @transform_1(%arg0: i32) -> (i32, i32) {
    %c0_i32 = arith.constant 0 : i32
    %c0_i32_0 = arith.constant 0 : i32
    %c0_i32_1 = arith.constant 0 : i32
    return %c0_i32, %c0_i32_0 : i32, i32
  }
  func.func @transform_2(%arg0: i32) -> (i32, i32) {
    %c0_i32 = arith.constant 0 : i32
    %c0_i32_0 = arith.constant 0 : i32
    %c0_i32_1 = arith.constant 0 : i32
    return %c0_i32, %c0_i32_0 : i32, i32
  }
  func.func @transform_3(%arg0: i32) -> (i32, i32) {
    %c0_i32 = arith.constant 0 : i32
    %c0_i32_0 = arith.constant 0 : i32
    return %arg0, %c0_i32 : i32, i32
  }
}

</mosaic_0001>

<llo_original>
// kernel: tpu_custom_call.1
$region0: #{tpu_custom_call.1}
  #allocation0 [shape = 'u32[]', space=smem, size = 0x4, offset = 0x4, fixed_abs, tag = 'smem constant byte address 0x4 - core index']
  #allocation1 [shape = 'u32[144,128]{1,0:T(1,128)}', space=vmem, size = 0x12000, scoped, tag = 'internal scratch']
  %s0 = inlined_call_operand.hbm [shape: f32[16,128], index: 0, kind: input, shape index: {}]
  %s1 = inlined_call_operand.hbm [shape: f32[128,128], index: 1, kind: input, shape index: {}]
  %s2 = inlined_call_operand.hbm [shape: f32[128,128], index: 2, kind: input, shape index: {}]
  %s3 = inlined_call_operand.hbm [shape: f32[16,128], index: 3, kind: output, shape index: {}]
  %s4 = sld [smem:[#allocation0]]
  $region57: #{tpu_custom_call.1} parent=0
    _
  %s6 = ssub.s32 1, %s4
  %s7 = scalar_select 0, %s6, %s4
  $region1: #{tpu_custom_call.1} parent=0
    #allocation2 [shape = 'u8[8192]{0}', space=vmem, size = 0x2000, scoped, tag = 'input window, operand 0']
    #allocation3 [shape = 's32[2]{0}', space=sflag, size = 0x8, scoped, tag = 'scoped memory for tpu_custom_call.1']
    #allocation4 [shape = 's32[2]{0}', space=sflag, size = 0x8, scoped, tag = 'scoped memory for tpu_custom_call.1']
    #allocation5 [shape = 'u8[65536]{0}', space=vmem, size = 0x10000, scoped, tag = 'input window, operand 1, single buffered']
    #allocation6 [shape = 's32[1]{0}', space=sflag, size = 0x4, scoped, tag = 'scoped memory for tpu_custom_call.1']
    #allocation7 [shape = 'u8[65536]{0}', space=vmem, size = 0x10000, scoped, tag = 'input window, operand 2, single buffered']
    #allocation8 [shape = 'u8[8192]{0}', space=vmem, size = 0x2000, scoped, tag = 'output window, operand 0']
    %8 = vsyncpa [#allocation3], 0
    %s9 = scalar_lea.sflag [#allocation3], 1
    %10 = vsyncpa %s9, 0
    %11 = vsyncpa [#allocation6], 0
    %12 = vsyncpa [#allocation4], 0
    %s13 = scalar_lea.sflag [#allocation4], 1
    %14 = vsyncpa %s13, 0
    loop: start=0, step=1, limit=4
    $region2: #{tpu_custom_call.1} parent=1 // loop_pre_header
      _
    $region3: #{tpu_custom_call.1} parent=1 // loop_header
      %s16 = sphi 0, %s20
      %p17 = scmp.ge.s32.totalorder %s16, 4
      %s26 = sphi 0, %s28
      %s29 = sphi 0, %s26
      %s30 = sphi 0, %s29
      %s46 = sphi 0, %s30
      %s50 = sphi 0, %s50
      %s52 = sphi 0, %s50
      %s53 = sphi 0, %s52
      %s67 = sphi 0, %s53
      %s71 = sphi 0, %s71
      %s73 = sphi 0, %s71
      %s74 = sphi 0, %s73
      %s88 = sphi 0, %s74
      %s94 = sphi 0, %s96
      %s97 = sphi 0, %s94
      %s98 = sphi 0, %s97
      %s114 = sphi 0, %s98
    $region4: #{tpu_custom_call.1} parent=1 // loop_header_branch
      %19 = sbr.rel (%p17) target = $region8
    $region5: #{tpu_custom_call.1} parent=1 // loop_body
      %s21 = ssub.s32 %s16, 1
      %s22 = ssub.s32 %s16, 2
      %s23 = sadd.s32 %s16, 1
      %s24 = ssub.s32 %s16, %s23
      %p25 = scmp.eq.s32.totalorder %s24, 0
      %s27 = sadd.s32 %s26, 1
      %s28 = scalar_select %p25, %s26, %s27
      %p31 = pneg %p25
      %p32 = scmp.eq.s32.totalorder %s16, 1
      %p33 = por %p31, %p32
      %p34 = scmp.ne.s32.totalorder %s26, %s29
      %p35 = scmp.eq.s32.totalorder %s16, 0
      %p36 = por %p34, %p35
      %p37 = scmp.ne.s32.totalorder %s26, %s29
      %p38 = scmp.eq.s32.totalorder %s21, 1
      %p39 = por %p37, %p38
      %p40 = scmp.ne.s32.totalorder %s29, %s30
      %p41 = scmp.eq.s32.totalorder %s21, 0
      %p42 = por %p40, %p41
      %p43 = scmp.ne.s32.totalorder %s29, %s30
      %p44 = scmp.eq.s32.totalorder %s22, 1
      %p45 = por %p43, %p44
      %p47 = scmp.ne.s32.totalorder %s30, %s46
      %p48 = scmp.eq.s32.totalorder %s22, 0
      %p49 = por %p47, %p48
      %s51 = sadd.s32 %s50, 1
      %p54 = scmp.eq.s32.totalorder %s16, 1
      %p55 = scmp.ne.s32.totalorder %s50, %s52
      %p56 = scmp.eq.s32.totalorder %s16, 0
      %p57 = por %p55, %p56
      %p58 = scmp.ne.s32.totalorder %s50, %s52
      %p59 = scmp.eq.s32.totalorder %s21, 1
      %p60 = por %p58, %p59
      %p61 = scmp.ne.s32.totalorder %s52, %s53
      %p62 = scmp.eq.s32.totalorder %s21, 0
      %p63 = por %p61, %p62
      %p64 = scmp.ne.s32.totalorder %s52, %s53
      %p65 = scmp.eq.s32.totalorder %s22, 1
      %p66 = por %p64, %p65
      %p68 = scmp.ne.s32.totalorder %s53, %s67
      %p69 = scmp.eq.s32.totalorder %s22, 0
      %p70 = por %p68, %p69
      %s72 = sadd.s32 %s71, 1
      %p75 = scmp.eq.s32.totalorder %s16, 1
      %p76 = scmp.ne.s32.totalorder %s71, %s73
      %p77 = scmp.eq.s32.totalorder %s16, 0
      %p78 = por %p76, %p77
      %p79 = scmp.ne.s32.totalorder %s71, %s73
      %p80 = scmp.eq.s32.totalorder %s21, 1
      %p81 = por %p79, %p80
      %p82 = scmp.ne.s32.totalorder %s73, %s74
      %p83 = scmp.eq.s32.totalorder %s21, 0
      %p84 = por %p82, %p83
      %p85 = scmp.ne.s32.totalorder %s73, %s74
      %p86 = scmp.eq.s32.totalorder %s22, 1
      %p87 = por %p85, %p86
      %p89 = scmp.ne.s32.totalorder %s74, %s88
      %p90 = scmp.eq.s32.totalorder %s22, 0
      %p91 = por %p89, %p90
      %s92 = ssub.s32 %s16, %s23
      %p93 = scmp.eq.s32.totalorder %s92, 0
      %s95 = sadd.s32 %s94, 1
      %s96 = scalar_select %p93, %s94, %s95
      %p99 = pneg %p93
      %p100 = scmp.eq.s32.totalorder %s16, 1
      %p101 = por %p99, %p100
      %p102 = scmp.ne.s32.totalorder %s94, %s97
      %p103 = scmp.eq.s32.totalorder %s16, 0
      %p104 = por %p102, %p103
      %p105 = scmp.ne.s32.totalorder %s94, %s97
      %p106 = scmp.eq.s32.totalorder %s21, 1
      %p107 = por %p105, %p106
      %p108 = scmp.ne.s32.totalorder %s97, %s98
      %p109 = scmp.eq.s32.totalorder %s21, 0
      %p110 = por %p108, %p109
      %p111 = scmp.ne.s32.totalorder %s97, %s98
      %p112 = scmp.eq.s32.totalorder %s22, 1
      %p113 = por %p111, %p112
      %p115 = scmp.ne.s32.totalorder %s98, %s114
      %p116 = scmp.eq.s32.totalorder %s22, 0
      %p117 = por %p115, %p116
      %p118 = scmp.le.s32.totalorder 1, %s16
      %p119 = scmp.lt.s32.totalorder %s16, 3
      %p120 = pnand %p118, %p119
      %p121 = pneg %p120
      // Predicated region
      $region9: #{tpu_custom_call.1} parent=5 // pred_check
        _
      $region10: #{tpu_custom_call.1} parent=5 // pred_check_branch
        %123 = sbr.rel (%p120) target = $region12
      $region11: #{tpu_custom_call.1} parent=5 // pred_region
        %s124 = ssub.s32 %s16, 1
        // Predicated region
        $region13: #{tpu_custom_call.1} parent=11 // pred_check
          %p125 = pneg %p63
        $region14: #{tpu_custom_call.1} parent=11 // pred_check_branch
          %127 = sbr.rel (%p125) target = $region16
        $region15: #{tpu_custom_call.1} parent=11 // pred_region
          %s129 = ssub.s32 2048, 2048
          %130 = vsyncadd [#allocation6], %s129
          %s131 = sshll.u32 [#allocation5], 4
          %s132 = int_to_ptr.vmem [resolvable:$true] %s131
          %137 = dma.hbm_to_vmem [thread:$0]  %s1, 2048, %s132, [#allocation6], 128, 128, 8
        $region16: #{tpu_custom_call.1} parent=11 // pred_fallthru
          _
        // Predicated region
        $region17: #{tpu_custom_call.1} parent=11 // pred_check
          %p138 = pneg %p84
        $region18: #{tpu_custom_call.1} parent=11 // pred_check_branch
          %140 = sbr.rel (%p138) target = $region20
        $region19: #{tpu_custom_call.1} parent=11 // pred_region
          %s142 = ssub.s32 2048, 2048
          %143 = vsyncadd [#allocation6], %s142
          %s144 = sshll.u32 [#allocation7], 4
          %s145 = int_to_ptr.vmem [resolvable:$true] %s144
          %150 = dma.hbm_to_vmem [thread:$0]  %s2, 2048, %s145, [#allocation6], 128, 128, 8
        $region20: #{tpu_custom_call.1} parent=11 // pred_fallthru
          _
      $region12: #{tpu_custom_call.1} parent=5 // pred_fallthru
        _
      %p151 = scmp.lt.s32.totalorder %s16, 2
      // Predicated region
      $region21: #{tpu_custom_call.1} parent=5 // pred_check
        %p152 = pneg %p151
      $region22: #{tpu_custom_call.1} parent=5 // pred_check_branch
        %154 = sbr.rel (%p152) target = $region24
      $region23: #{tpu_custom_call.1} parent=5 // pred_region
        // Predicated region
        $region25: #{tpu_custom_call.1} parent=23 // pred_check
          %p155 = pneg %p36
        $region26: #{tpu_custom_call.1} parent=23 // pred_check_branch
          %157 = sbr.rel (%p155) target = $region28
        $region27: #{tpu_custom_call.1} parent=23 // pred_region
          %s158 = sand.u32 %s26, 1
          %s159 = scalar_lea.sflag [#allocation3], %s158
          %s160 = sand.u32 %s26, 1
          %s161 = smul.addr %s160, 8
          %s162 = scalar_lea.vmem [#allocation2], %s161
          %s164 = ssub.s32 128, 128
          %165 = vsyncadd %s159, %s164
          %s166 = smul.addr %s16, 128
          %s167 = scalar_lea.hbm %s0, %s166
          %s169 = sshll.u32 %s162, 4
          %s170 = int_to_ptr.vmem [resolvable:$true] %s169
          %172 = dma.hbm_to_vmem [thread:$0]  %s167, 128, %s170, %s159
        $region28: #{tpu_custom_call.1} parent=23 // pred_fallthru
          _
      $region24: #{tpu_custom_call.1} parent=5 // pred_fallthru
        _
      %p173 = scmp.le.s32.totalorder 1, %s16
      %p174 = scmp.lt.s32.totalorder %s16, 3
      %p175 = pnand %p173, %p174
      %p176 = pneg %p175
      // Predicated region
      $region29: #{tpu_custom_call.1} parent=5 // pred_check
        _
      $region30: #{tpu_custom_call.1} parent=5 // pred_check_branch
        %178 = sbr.rel (%p175) target = $region32
      $region31: #{tpu_custom_call.1} parent=5 // pred_region
        %s179 = ssub.s32 %s16, 1
        %s180 = sand.u32 %s29, 1
        %s181 = scalar_lea.sflag [#allocation3], %s180
        %s182 = sand.u32 %s29, 1
        %s183 = smul.addr %s182, 8
        %s184 = scalar_lea.vmem [#allocation2], %s183
        // Predicated region
        $region33: #{tpu_custom_call.1} parent=31 // pred_check
          %p185 = pneg %p42
        $region34: #{tpu_custom_call.1} parent=31 // pred_check_branch
          %187 = sbr.rel (%p185) target = $region36
        $region35: #{tpu_custom_call.1} parent=31 // pred_region
          %188 = dma.done %s181, 128
        $region36: #{tpu_custom_call.1} parent=31 // pred_fallthru
          _
        // Predicated region
        $region37: #{tpu_custom_call.1} parent=31 // pred_check
          %p189 = pneg %p63
        $region38: #{tpu_custom_call.1} parent=31 // pred_check_branch
          %191 = sbr.rel (%p189) target = $region40
        $region39: #{tpu_custom_call.1} parent=31 // pred_region
          %192 = dma.done [#allocation6], 2048
        $region40: #{tpu_custom_call.1} parent=31 // pred_fallthru
          _
        // Predicated region
        $region41: #{tpu_custom_call.1} parent=31 // pred_check
          %p193 = pneg %p84
        $region42: #{tpu_custom_call.1} parent=31 // pred_check_branch
          %195 = sbr.rel (%p193) target = $region44
        $region43: #{tpu_custom_call.1} parent=31 // pred_region
          %196 = dma.done [#allocation6], 2048
        $region44: #{tpu_custom_call.1} parent=31 // pred_fallthru
          _
        %s197 = sand.u32 %s29, 1
        %s198 = scalar_lea.sflag [#allocation3], %s197
        %s199 = sand.u32 %s29, 1
        %s200 = smul.addr %s199, 8
        %s201 = scalar_lea.vmem [#allocation2], %s200
        %p202 = pneg %p42
        %p203 = pneg %p39
        %p204 = pneg %p63
        %p205 = pneg %p60
        %p206 = pneg %p84
        %p207 = pneg %p81
        %p208 = pneg %p110
        %p209 = pneg %p107
        %s210 = sand.u32 %s97, 1
        %s211 = scalar_lea.sflag [#allocation4], %s210
        %s212 = sand.u32 %s97, 1
        %s213 = smul.addr %s212, 8
        %s214 = scalar_lea.vmem [#allocation8], %s213
        %v215 = vld [vmem:[%s184] sm:$0xff]
        %v216 = vld [vmem:[#allocation5] sm:$0xff]
        %v217 = vld [vmem:[#allocation5 + $0x8] sm:$0xff]
        %v218 = vld [vmem:[#allocation5 + $0x10] sm:$0xff]
        %v219 = vld [vmem:[#allocation5 + $0x18] sm:$0xff]
        %v220 = vld [vmem:[#allocation5 + $0x20] sm:$0xff]
        %v221 = vld [vmem:[#allocation5 + $0x28] sm:$0xff]
        %v222 = vld [vmem:[#allocation5 + $0x30] sm:$0xff]
        %v223 = vld [vmem:[#allocation5 + $0x38] sm:$0xff]
        %v224 = vld [vmem:[#allocation5 + $0x40] sm:$0xff]
        %v225 = vld [vmem:[#allocation5 + $0x48] sm:$0xff]
        %v226 = vld [vmem:[#allocation5 + $0x50] sm:$0xff]
        %v227 = vld [vmem:[#allocation5 + $0x58] sm:$0xff]
        %v228 = vld [vmem:[#allocation5 + $0x60] sm:$0xff]
        %v229 = vld [vmem:[#allocation5 + $0x68] sm:$0xff]
        %v230 = vld [vmem:[#allocation5 + $0x70] sm:$0xff]
        %v231 = vld [vmem:[#allocation5 + $0x78] sm:$0xff]
        %232 = vmatprep.subr.mxu0 0.0
        %233 = vmatpush1.msra.mxu0 %v231
        %234 = vmatprep.subr.mxu0 0.0
        %235 = vmatpush1.msra.mxu0 %v230
        %236 = vmatprep.subr.mxu0 0.0
        %237 = vmatpush1.msra.mxu0 %v229
        %238 = vmatprep.subr.mxu0 0.0
        %239 = vmatpush1.msra.mxu0 %v228
        %240 = vmatprep.subr.mxu0 0.0
        %241 = vmatpush1.msra.mxu0 %v227
        %242 = vmatprep.subr.mxu0 0.0
        %243 = vmatpush1.msra.mxu0 %v226
        %244 = vmatprep.subr.mxu0 0.0
        %245 = vmatpush1.msra.mxu0 %v225
        %246 = vmatprep.subr.mxu0 0.0
        %247 = vmatpush1.msra.mxu0 %v224
        %248 = vmatprep.subr.mxu0 0.0
        %249 = vmatpush1.msra.mxu0 %v223
        %250 = vmatprep.subr.mxu0 0.0
        %251 = vmatpush1.msra.mxu0 %v222
        %252 = vmatprep.subr.mxu0 0.0
        %253 = vmatpush1.msra.mxu0 %v221
        %254 = vmatprep.subr.mxu0 0.0
        %255 = vmatpush1.msra.mxu0 %v220
        %256 = vmatprep.subr.mxu0 0.0
        %257 = vmatpush1.msra.mxu0 %v219
        %258 = vmatprep.subr.mxu0 0.0
        %259 = vmatpush1.msra.mxu0 %v218
        %260 = vmatprep.subr.mxu0 0.0
        %261 = vmatpush1.msra.mxu0 %v217
        %262 = vmatprep.subr.mxu0 0.0
        %263 = vmatpush1.msra.mxu0 %v216
        %264 = vmatprep.subr.mxu0 0.0
        %265 = vmatpush2.msra.mxu0 0.0
        %266 = vmatprep.subr.mxu0 0.0
        %267 = vmatpush2.msra.mxu0 0.0
        %268 = vmatprep.subr.mxu0 0.0
        %269 = vmatpush2.msra.mxu0 0.0
        %270 = vmatprep.subr.mxu0 0.0
        %271 = vmatpush2.msra.mxu0 0.0
        %272 = vmatprep.subr.mxu0 0.0
        %273 = vmatpush2.msra.mxu0 0.0
        %274 = vmatprep.subr.mxu0 0.0
        %275 = vmatpush2.msra.mxu0 0.0
        %276 = vmatprep.subr.mxu0 0.0
        %277 = vmatpush2.msra.mxu0 0.0
        %278 = vmatprep.subr.mxu0 0.0
        %279 = vmatpush2.msra.mxu0 0.0
        %280 = vmatprep.subr.mxu0 0.0
        %281 = vmatpush2.msra.mxu0 0.0
        %282 = vmatprep.subr.mxu0 0.0
        %283 = vmatpush2.msra.mxu0 0.0
        %284 = vmatprep.subr.mxu0 0.0
        %285 = vmatpush2.msra.mxu0 0.0
        %286 = vmatprep.subr.mxu0 0.0
        %287 = vmatpush2.msra.mxu0 0.0
        %288 = vmatprep.subr.mxu0 0.0
        %289 = vmatpush2.msra.mxu0 0.0
        %290 = vmatprep.subr.mxu0 0.0
        %291 = vmatpush2.msra.mxu0 0.0
        %292 = vmatprep.subr.mxu0 0.0
        %293 = vmatpush2.msra.mxu0 0.0
        %294 = vmatprep.subr.mxu0 0.0
        %295 = vmatpush2.msra.mxu0 0.0
        %296 = vmatprep.mubr.f32.mxu0 0.0
        %297 = vmatmul.mubr.f32.gmra.mxu0 %v215
        %v298 = vpop.f32.mrf.mxu0
        %v299 = vadd.f32 0.0, %v298
        %v300 = vpop.f32.mrf.mxu0
        %301 = vdwg.mxu0
        %v302 = vmax.f32 %v299, 0.0
        %v303 = vld [vmem:[#allocation7] sm:$0xff]
        %v304 = vld [vmem:[#allocation7 + $0x8] sm:$0xff]
        %v305 = vld [vmem:[#allocation7 + $0x10] sm:$0xff]
        %v306 = vld [vmem:[#allocation7 + $0x18] sm:$0xff]
        %v307 = vld [vmem:[#allocation7 + $0x20] sm:$0xff]
        %v308 = vld [vmem:[#allocation7 + $0x28] sm:$0xff]
        %v309 = vld [vmem:[#allocation7 + $0x30] sm:$0xff]
        %v310 = vld [vmem:[#allocation7 + $0x38] sm:$0xff]
        %v311 = vld [vmem:[#allocation7 + $0x40] sm:$0xff]
        %v312 = vld [vmem:[#allocation7 + $0x48] sm:$0xff]
        %v313 = vld [vmem:[#allocation7 + $0x50] sm:$0xff]
        %v314 = vld [vmem:[#allocation7 + $0x58] sm:$0xff]
        %v315 = vld [vmem:[#allocation7 + $0x60] sm:$0xff]
        %v316 = vld [vmem:[#allocation7 + $0x68] sm:$0xff]
        %v317 = vld [vmem:[#allocation7 + $0x70] sm:$0xff]
        %v318 = vld [vmem:[#allocation7 + $0x78] sm:$0xff]
        %319 = vmatprep.subr.mxu0 0.0
        %320 = vmatpush1.msra.mxu0 %v318
        %321 = vmatprep.subr.mxu0 0.0
        %322 = vmatpush1.msra.mxu0 %v317
        %323 = vmatprep.subr.mxu0 0.0
        %324 = vmatpush1.msra.mxu0 %v316
        %325 = vmatprep.subr.mxu0 0.0
        %326 = vmatpush1.msra.mxu0 %v315
        %327 = vmatprep.subr.mxu0 0.0
        %328 = vmatpush1.msra.mxu0 %v314
        %329 = vmatprep.subr.mxu0 0.0
        %330 = vmatpush1.msra.mxu0 %v313
        %331 = vmatprep.subr.mxu0 0.0
        %332 = vmatpush1.msra.mxu0 %v312
        %333 = vmatprep.subr.mxu0 0.0
        %334 = vmatpush1.msra.mxu0 %v311
        %335 = vmatprep.subr.mxu0 0.0
        %336 = vmatpush1.msra.mxu0 %v310
        %337 = vmatprep.subr.mxu0 0.0
        %338 = vmatpush1.msra.mxu0 %v309
        %339 = vmatprep.subr.mxu0 0.0
        %340 = vmatpush1.msra.mxu0 %v308
        %341 = vmatprep.subr.mxu0 0.0
        %342 = vmatpush1.msra.mxu0 %v307
        %343 = vmatprep.subr.mxu0 0.0
        %344 = vmatpush1.msra.mxu0 %v306
        %345 = vmatprep.subr.mxu0 0.0
        %346 = vmatpush1.msra.mxu0 %v305
        %347 = vmatprep.subr.mxu0 0.0
        %348 = vmatpush1.msra.mxu0 %v304
        %349 = vmatprep.subr.mxu0 0.0
        %350 = vmatpush1.msra.mxu0 %v303
        %351 = vmatprep.subr.mxu0 0.0
        %352 = vmatpush2.msra.mxu0 0.0
        %353 = vmatprep.subr.mxu0 0.0
        %354 = vmatpush2.msra.mxu0 0.0
        %355 = vmatprep.subr.mxu0 0.0
        %356 = vmatpush2.msra.mxu0 0.0
        %357 = vmatprep.subr.mxu0 0.0
        %358 = vmatpush2.msra.mxu0 0.0
        %359 = vmatprep.subr.mxu0 0.0
        %360 = vmatpush2.msra.mxu0 0.0
        %361 = vmatprep.subr.mxu0 0.0
        %362 = vmatpush2.msra.mxu0 0.0
        %363 = vmatprep.subr.mxu0 0.0
        %364 = vmatpush2.msra.mxu0 0.0
        %365 = vmatprep.subr.mxu0 0.0
        %366 = vmatpush2.msra.mxu0 0.0
        %367 = vmatprep.subr.mxu0 0.0
        %368 = vmatpush2.msra.mxu0 0.0
        %369 = vmatprep.subr.mxu0 0.0
        %370 = vmatpush2.msra.mxu0 0.0
        %371 = vmatprep.subr.mxu0 0.0
        %372 = vmatpush2.msra.mxu0 0.0
        %373 = vmatprep.subr.mxu0 0.0
        %374 = vmatpush2.msra.mxu0 0.0
        %375 = vmatprep.subr.mxu0 0.0
        %376 = vmatpush2.msra.mxu0 0.0
        %377 = vmatprep.subr.mxu0 0.0
        %378 = vmatpush2.msra.mxu0 0.0
        %379 = vmatprep.subr.mxu0 0.0
        %380 = vmatpush2.msra.mxu0 0.0
        %381 = vmatprep.subr.mxu0 0.0
        %382 = vmatpush2.msra.mxu0 0.0
        %383 = vmatprep.mubr.f32.mxu0 0.0
        %384 = vmatmul.mubr.f32.gmra.mxu0 %v302
        %v385 = vpop.f32.mrf.mxu0
        %v386 = vadd.f32 0.0, %v385
        %v387 = vpop.f32.mrf.mxu0
        %388 = vdwg.mxu0
        %389 = vst [vmem:[%s214] sm:$0xff] %v386
        %s390 = sand.u32 %s97, 1
        %s391 = scalar_lea.sflag [#allocation4], %s390
        %s392 = sand.u32 %s97, 1
        %s393 = smul.addr %s392, 8
        %s394 = scalar_lea.vmem [#allocation8], %s393
        // Predicated region
        $region45: #{tpu_custom_call.1} parent=31 // pred_check
          %p395 = pneg %p107
        $region46: #{tpu_custom_call.1} parent=31 // pred_check_branch
          %397 = sbr.rel (%p395) target = $region48
        $region47: #{tpu_custom_call.1} parent=31 // pred_region
          %s399 = ssub.s32 128, 128
          %400 = vsyncadd %s391, %s399
          %s401 = smul.addr %s21, 128
          %s402 = scalar_lea.hbm %s3, %s401
          %s404 = sshll.u32 %s394, 4
          %s405 = int_to_ptr.vmem [resolvable:$true] %s404
          %407 = dma.vmem_to_hbm [thread:$0]  %s405, 128, %s402, %s391
        $region48: #{tpu_custom_call.1} parent=31 // pred_fallthru
          _
      $region32: #{tpu_custom_call.1} parent=5 // pred_fallthru
        _
      %p408 = scmp.le.s32.totalorder 2, %s16
      // Predicated region
      $region49: #{tpu_custom_call.1} parent=5 // pred_check
        %p409 = pneg %p408
      $region50: #{tpu_custom_call.1} parent=5 // pred_check_branch
        %411 = sbr.rel (%p409) target = $region52
      $region51: #{tpu_custom_call.1} parent=5 // pred_region
        %s412 = ssub.s32 %s16, 2
        // Predicated region
        $region53: #{tpu_custom_call.1} parent=51 // pred_check
          %p413 = pneg %p113
        $region54: #{tpu_custom_call.1} parent=51 // pred_check_branch
          %415 = sbr.rel (%p413) target = $region56
        $region55: #{tpu_custom_call.1} parent=51 // pred_region
          %s416 = sand.u32 %s98, 1
          %s417 = scalar_lea.sflag [#allocation4], %s416
          %s418 = sand.u32 %s98, 1
          %s419 = smul.addr %s418, 8
          %s420 = scalar_lea.vmem [#allocation8], %s419
          %421 = dma.done %s417, 128
        $region56: #{tpu_custom_call.1} parent=51 // pred_fallthru
          _
      $region52: #{tpu_custom_call.1} parent=5 // pred_fallthru
        _
    $region6: #{tpu_custom_call.1} parent=1 // loop_footer
      %s20 = sadd.s32 1, %s16
    $region7: #{tpu_custom_call.1} parent=1 // loop_footer_branch
      %15 = sbr.rel target = $region3
    $region8: #{tpu_custom_call.1} parent=1 // loop_exit
      _
    %422 = vsyncpa [#allocation3], 1
    %s423 = scalar_lea.sflag [#allocation3], 1
    %424 = vsyncpa %s423, 1
    %425 = vsyncpa [#allocation6], 1
    %426 = vsyncpa [#allocation4], 1
    %s427 = scalar_lea.sflag [#allocation4], 1
    %428 = vsyncpa %s427, 1

</llo_original>
